<compile_context>
chip_gen: v7x
topology: tpu7x:2x2x1
jax: 0.10.0
libtpu: 0.0.40
codegen_flags: <defaults>
</compile_context>

<pallas_src>
import functools

import jax
import jax.numpy as jnp
from jax import lax
from jax.experimental import pallas as pl
from jax.experimental.pallas import tpu as pltpu

LOG_STD_MIN = -20.0
LOG_STD_MAX = 3.0


def _rup(x, m):
    return (x + m - 1) // m * m


def _policy_kernel(s_ref, p_ref, out_ref, *, S, H1, H2, P, A,
                   r_w2, r_wh, r_b1, r_b2, r_bh):
    """Two-layer MLP + fused (mean | log_std) head on one batch tile.

    s_ref:   (TB, S)  state tile
    p_ref:   (R, Cp)  packed parameter buffer (resident across grid steps)
    out_ref: (TB, P)  fused head output; cols [0,A) = mean, [A, A+C) = cov scale
    """
    x = s_ref[...]

    # ---- hidden layer 1 + relu --------------------------------------------
    w1 = p_ref[0:S, 0:H1]
    b1 = p_ref[r_b1:r_b1 + 1, 0:H1]
    h1 = jnp.dot(x, w1, preferred_element_type=jnp.float32) + b1
    h1 = jnp.maximum(h1, 0.0)

    # ---- hidden layer 2 + relu --------------------------------------------
    w2 = p_ref[r_w2:r_w2 + H1, 0:H2]
    b2 = p_ref[r_b2:r_b2 + 1, 0:H2]
    h2 = jnp.dot(h1, w2, preferred_element_type=jnp.float32) + b2
    h2 = jnp.maximum(h2, 0.0)

    # ---- fused head: one matmul produces [mean | log_std | zero padding] ---
    wh = p_ref[r_wh:r_wh + H2, 0:P]
    bh = p_ref[r_bh:r_bh + 1, 0:P]
    head = jnp.dot(h2, wh, preferred_element_type=jnp.float32) + bh  # (TB, P)

    # mean columns pass through; cov (and padding) columns get clamp + exp.
    col = lax.broadcasted_iota(jnp.int32, head.shape, 1)
    cov_branch = jnp.exp(jnp.clip(head, LOG_STD_MIN, LOG_STD_MAX))
    out_ref[...] = jnp.where(col < A, head, cov_branch)


def gaussian_policy_forward(state, params, action_dim, *, block_b=512):
    """Returns (mean, cov): mean (B, A), cov (B, A, A), like the torch module."""
    w1, b1, w2, b2, wm, bm, ws, bs = params
    S, H1 = w1.shape
    H2 = w2.shape[1]
    A = action_dim
    C = ws.shape[1]                     # 1 when simple_cov=True
    P = _rup(A + C, 128)                # lane-dense fused head width

    B = state.shape[0]
    TB = max(8, min(_rup(B, 8), _rup(block_b, 8)))
    B_pad = _rup(B, TB)

    # ---- pack every parameter into one 2-D buffer (sublane-aligned rows) ---
    r_w1 = 0
    r_w2 = _rup(S, 8)
    r_wh = r_w2 + _rup(H1, 8)
    r_b = r_wh + _rup(H2, 8)
    r_b1, r_b2, r_bh = r_b, r_b + 8, r_b + 16
    R = r_b + 24
    Cp = max(H1, H2, P)

    pbuf = jnp.zeros((R, Cp), jnp.float32)
    pbuf = pbuf.at[r_w1:r_w1 + S, 0:H1].set(w1)
    pbuf = pbuf.at[r_w2:r_w2 + H1, 0:H2].set(w2)
    pbuf = pbuf.at[r_wh:r_wh + H2, 0:A].set(wm)          # fused head: [wm | ws]
    pbuf = pbuf.at[r_wh:r_wh + H2, A:A + C].set(ws)
    pbuf = pbuf.at[r_b1:r_b1 + 1, 0:H1].set(b1.reshape(1, H1))
    pbuf = pbuf.at[r_b2:r_b2 + 1, 0:H2].set(b2.reshape(1, H2))
    pbuf = pbuf.at[r_bh:r_bh + 1, 0:A].set(bm.reshape(1, A))
    pbuf = pbuf.at[r_bh:r_bh + 1, A:A + C].set(bs.reshape(1, C))

    state_p = state if B_pad == B else jnp.pad(state, ((0, B_pad - B), (0, 0)))

    kernel = functools.partial(
        _policy_kernel, S=S, H1=H1, H2=H2, P=P, A=A,
        r_w2=r_w2, r_wh=r_wh, r_b1=r_b1, r_b2=r_b2, r_bh=r_bh)

    head = pl.pallas_call(
        kernel,
        grid=(B_pad // TB,),
        in_specs=[
            pl.BlockSpec((TB, S), lambda i: (i, 0)),      # batch-tiled state
            pl.BlockSpec((R, Cp), lambda i: (0, 0)),      # params stay resident
        ],
        out_specs=pl.BlockSpec((TB, P), lambda i: (i, 0)),
        out_shape=jax.ShapeDtypeStruct((B_pad, P), jnp.float32),
        compiler_params=pltpu.CompilerParams(
            dimension_semantics=("parallel",)),
    )(state_p, pbuf)

    mean = head[:B, :A]
    cov_scale = head[:B, A:A + C]
    # torch: cov.unsqueeze(dim=2) * eye(action_dim)  -> (B, A, A)
    eye = jnp.eye(A, dtype=jnp.float32)
    cov = cov_scale[:, :, None] * eye
    return mean, cov


def init_params(key, state_dim, hidden1, hidden2, action_dim,
                simple_cov=True, weight_init_std=1e-4):
    cov_output_dim = 1 if simple_cov else action_dim
    ks = jax.random.split(key, 8)
    w1 = weight_init_std * jax.random.normal(ks[0], (state_dim, hidden1), jnp.float32)
    b1 = weight_init_std * jax.random.normal(ks[1], (1, hidden1), jnp.float32)
    w2 = weight_init_std * jax.random.normal(ks[2], (hidden1, hidden2), jnp.float32)
    b2 = weight_init_std * jax.random.normal(ks[3], (1, hidden2), jnp.float32)
    wm = weight_init_std * jax.random.normal(ks[4], (hidden2, action_dim), jnp.float32)
    bm = weight_init_std * jax.random.normal(ks[5], (1, action_dim), jnp.float32)
    ws = weight_init_std * jax.random.normal(ks[6], (hidden2, cov_output_dim), jnp.float32)
    bs = weight_init_std * jax.random.normal(ks[7], (1, cov_output_dim), jnp.float32)
    return (w1, b1, w2, b2, wm, bm, ws, bs)


if __name__ == "__main__":
    key = jax.random.PRNGKey(0)
    k_param, k_state = jax.random.split(key)

    batch = 50          # not a multiple of the batch tile: exercises padding
    state_dim = 16
    hidden1 = 32
    hidden2 = 32
    action_dim = 4

    params = init_params(k_param, state_dim, hidden1, hidden2, action_dim,
                         simple_cov=True, weight_init_std=1e-4)
    state = jax.random.normal(k_state, (batch, state_dim), jnp.float32)

    # block_b=32 -> grid=(2,) at this batch size, exercising the batch pipeline.
    mean, cov = gaussian_policy_forward(state, params, action_dim, block_b=32)
    jax.block_until_ready((mean, cov))

    # reference check in plain JAX
    w1, b1, w2, b2, wm, bm, ws, bs = params
    h1 = jnp.maximum(state @ w1 + b1, 0.0)
    h2 = jnp.maximum(h1 @ w2 + b2, 0.0)
    mean_ref = h2 @ wm + bm
    cov_ref = jnp.exp(jnp.clip(h2 @ ws + bs, LOG_STD_MIN, LOG_STD_MAX))[:, :, None] \
        * jnp.eye(action_dim, dtype=jnp.float32)

    assert mean.shape == (batch, action_dim)
    assert cov.shape == (batch, action_dim, action_dim)
    assert jnp.allclose(mean, mean_ref, atol=1e-5), "mean mismatch"
    assert jnp.allclose(cov, cov_ref, atol=1e-5), "cov mismatch"

    print("KERNEL_OK")
</pallas_src>

<mosaic_0001>
module attributes {stable_mosaic.version = 11 : i64} {
  func.func @_policy_kernel(%arg0: i32, %arg1: memref<32x16xf32, #tpu.memory_space<vmem>>, %arg2: memref<104x128xf32, #tpu.memory_space<vmem>>, %arg3: memref<32x128xf32, #tpu.memory_space<vmem>>) attributes {dimension_semantics = [#tpu.dimension_semantics<parallel>], iteration_bounds = array<i64: 2>, scalar_prefetch = 0 : i64, scratch_operands = 0 : i64, tpu.core_type = #tpu.core_type<tc>, window_params = [{transform_indices = @transform_0, window_bounds = array<i64: 32, 16>}, {pipeline_mode = #tpu.pipeline_mode<synchronous>, transform_indices = @transform_1, window_bounds = array<i64: 104, 128>}, {transform_indices = @transform_2, window_bounds = array<i64: 32, 128>}]} {
    %c0 = arith.constant 0 : index
    %c0_0 = arith.constant 0 : index
    %0 = vector.load %arg1[%c0, %c0_0] : memref<32x16xf32, #tpu.memory_space<vmem>>, vector<32x16xf32>
    %c0_1 = arith.constant 0 : index
    %c0_2 = arith.constant 0 : index
    %1 = vector.load %arg2[%c0_1, %c0_2] : memref<104x128xf32, #tpu.memory_space<vmem>>, vector<16x32xf32>
    %c80 = arith.constant 80 : index
    %c0_3 = arith.constant 0 : index
    %2 = vector.load %arg2[%c80, %c0_3] : memref<104x128xf32, #tpu.memory_space<vmem>>, vector<1x32xf32>
    %cst = arith.constant dense<0.000000e+00> : vector<32x32xf32>
    %3 = tpu.matmul %0, %1, %cst {dimension_numbers = #tpu.dot_dimension_numbers<[1], [0], [0], [1], [0, 0, 1, 1], [], []>} : vector<32x16xf32>, vector<16x32xf32>, vector<32x32xf32> -> vector<32x32xf32>
    %4 = vector.broadcast %2 : vector<1x32xf32> to vector<32x32xf32>
    %5 = arith.addf %3, %4 : vector<32x32xf32>
    %cst_4 = arith.constant 0.000000e+00 : f32
    %6 = vector.broadcast %cst_4 : f32 to vector<32x32xf32>
    %7 = arith.maximumf %5, %6 : vector<32x32xf32>
    %c16 = arith.constant 16 : index
    %c0_5 = arith.constant 0 : index
    %8 = vector.load %arg2[%c16, %c0_5] : memref<104x128xf32, #tpu.memory_space<vmem>>, vector<32x32xf32>
    %c88 = arith.constant 88 : index
    %c0_6 = arith.constant 0 : index
    %9 = vector.load %arg2[%c88, %c0_6] : memref<104x128xf32, #tpu.memory_space<vmem>>, vector<1x32xf32>
    %cst_7 = arith.constant dense<0.000000e+00> : vector<32x32xf32>
    %10 = tpu.matmul %7, %8, %cst_7 {dimension_numbers = #tpu.dot_dimension_numbers<[1], [0], [0], [1], [0, 0, 1, 1], [], []>} : vector<32x32xf32>, vector<32x32xf32>, vector<32x32xf32> -> vector<32x32xf32>
    %11 = vector.broadcast %9 : vector<1x32xf32> to vector<32x32xf32>
    %12 = arith.addf %10, %11 : vector<32x32xf32>
    %cst_8 = arith.constant 0.000000e+00 : f32
    %13 = vector.broadcast %cst_8 : f32 to vector<32x32xf32>
    %14 = arith.maximumf %12, %13 : vector<32x32xf32>
    %c48 = arith.constant 48 : index
    %c0_9 = arith.constant 0 : index
    %15 = vector.load %arg2[%c48, %c0_9] : memref<104x128xf32, #tpu.memory_space<vmem>>, vector<32x128xf32>
    %c96 = arith.constant 96 : index
    %c0_10 = arith.constant 0 : index
    %16 = vector.load %arg2[%c96, %c0_10] : memref<104x128xf32, #tpu.memory_space<vmem>>, vector<1x128xf32>
    %cst_11 = arith.constant dense<0.000000e+00> : vector<32x128xf32>
    %17 = tpu.matmul %14, %15, %cst_11 {dimension_numbers = #tpu.dot_dimension_numbers<[1], [0], [0], [1], [0, 0, 1, 1], [], []>} : vector<32x32xf32>, vector<32x128xf32>, vector<32x128xf32> -> vector<32x128xf32>
    %18 = vector.broadcast %16 : vector<1x128xf32> to vector<32x128xf32>
    %19 = arith.addf %17, %18 : vector<32x128xf32>
    %20 = tpu.iota {dimensions = array<i32: 1>} : vector<32x128xi32>
    %cst_12 = arith.constant -2.000000e+01 : f32
    %cst_13 = arith.constant 3.000000e+00 : f32
    %21 = vector.broadcast %cst_12 : f32 to vector<32x128xf32>
    %22 = arith.maximumf %21, %19 : vector<32x128xf32>
    %23 = vector.broadcast %cst_13 : f32 to vector<32x128xf32>
    %24 = arith.minimumf %23, %22 : vector<32x128xf32>
    %25 = math.exp %24 : vector<32x128xf32>
    %c4_i32 = arith.constant 4 : i32
    %26 = vector.broadcast %c4_i32 : i32 to vector<32x128xi32>
    %27 = arith.cmpi slt, %20, %26 : vector<32x128xi32>
    %28 = arith.select %27, %19, %25 : vector<32x128xi1>, vector<32x128xf32>
    %c0_14 = arith.constant 0 : index
    %c0_15 = arith.constant 0 : index
    %29 = vector.load %arg3[%c0_14, %c0_15] : memref<32x128xf32, #tpu.memory_space<vmem>>, vector<32x128xf32>
    tpu.vector_store %arg3[%c0_14, %c0_15], %28 {strides = array<i32>} : memref<32x128xf32, #tpu.memory_space<vmem>>, vector<32x128xf32>,
    return
  }
  func.func @transform_0(%arg0: i32) -> (i32, i32) {
    %c0_i32 = arith.constant 0 : i32
    %c0_i32_0 = arith.constant 0 : i32
    return %arg0, %c0_i32 : i32, i32
  }
  func.func @transform_1(%arg0: i32) -> (i32, i32) {
    %c0_i32 = arith.constant 0 : i32
    %c0_i32_0 = arith.constant 0 : i32
    %c0_i32_1 = arith.constant 0 : i32
    return %c0_i32, %c0_i32_0 : i32, i32
  }
  func.func @transform_2(%arg0: i32) -> (i32, i32) {
    %c0_i32 = arith.constant 0 : i32
    %c0_i32_0 = arith.constant 0 : i32
    return %arg0, %c0_i32 : i32, i32
  }
}

</mosaic_0001>

<llo_original>
// kernel: tpu_custom_call.1
$region0: #{tpu_custom_call.1}
  #allocation0 [shape = 'u32[]', space=smem, size = 0x4, offset = 0x4, fixed_abs, tag = 'smem constant byte address 0x4 - core index']
  #allocation1 [shape = 'u32[144,128]{1,0:T(1,128)}', space=vmem, size = 0x12000, scoped, tag = 'internal scratch']
  %s0 = inlined_call_operand.vmem [shape: f32[64,16], index: 0, kind: input, shape index: {}]
  %s1 = inlined_call_operand.hbm [shape: f32[104,128], index: 1, kind: input, shape index: {}]
  %s2 = inlined_call_operand.hbm [shape: f32[64,128], index: 2, kind: output, shape index: {}]
  %s3 = sld [smem:[#allocation0]]
  $region45: #{tpu_custom_call.1} parent=0
    _
  %s5 = ssub.s32 1, %s3
  %s6 = scalar_select 0, %s5, %s3
  $region1: #{tpu_custom_call.1} parent=0
    #allocation2 [shape = 'u8[53248]{0}', space=vmem, size = 0xd000, scoped, tag = 'input window, operand 1, single buffered']
    #allocation3 [shape = 's32[2]{0}', space=sflag, size = 0x8, scoped, tag = 'scoped memory for tpu_custom_call.1']
    #allocation4 [shape = 's32[2]{0}', space=sflag, size = 0x8, scoped, tag = 'scoped memory for tpu_custom_call.1']
    #allocation5 [shape = 'u8[32768]{0}', space=vmem, size = 0x8000, scoped, tag = 'output window, operand 0']
    %7 = vsyncpa [#allocation3], 0
    %8 = vsyncpa [#allocation4], 0
    %s9 = scalar_lea.sflag [#allocation4], 1
    %10 = vsyncpa %s9, 0
    loop: start=0, step=1, limit=4
    $region2: #{tpu_custom_call.1} parent=1 // loop_pre_header
      _
    $region3: #{tpu_custom_call.1} parent=1 // loop_header
      %s12 = sphi 0, %s16
      %p13 = scmp.ge.s32.totalorder %s12, 4
      %s22 = sphi 0, %s24
      %s25 = sphi 0, %s22
      %s26 = sphi 0, %s25
      %s42 = sphi 0, %s26
      %s46 = sphi 0, %s46
      %s48 = sphi 0, %s46
      %s49 = sphi 0, %s48
      %s63 = sphi 0, %s49
      %s69 = sphi 0, %s71
      %s72 = sphi 0, %s69
      %s73 = sphi 0, %s72
      %s89 = sphi 0, %s73
    $region4: #{tpu_custom_call.1} parent=1 // loop_header_branch
      %15 = sbr.rel (%p13) target = $region8
    $region5: #{tpu_custom_call.1} parent=1 // loop_body
      %s17 = ssub.s32 %s12, 1
      %s18 = ssub.s32 %s12, 2
      %s19 = sadd.s32 %s12, 1
      %s20 = ssub.s32 %s12, %s19
      %p21 = scmp.eq.s32.totalorder %s20, 0
      %s23 = sadd.s32 %s22, 1
      %s24 = scalar_select %p21, %s22, %s23
      %p27 = pneg %p21
      %p28 = scmp.eq.s32.totalorder %s12, 1
      %p29 = por %p27, %p28
      %p30 = scmp.ne.s32.totalorder %s22, %s25
      %p31 = scmp.eq.s32.totalorder %s12, 0
      %p32 = por %p30, %p31
      %p33 = scmp.ne.s32.totalorder %s22, %s25
      %p34 = scmp.eq.s32.totalorder %s17, 1
      %p35 = por %p33, %p34
      %p36 = scmp.ne.s32.totalorder %s25, %s26
      %p37 = scmp.eq.s32.totalorder %s17, 0
      %p38 = por %p36, %p37
      %p39 = scmp.ne.s32.totalorder %s25, %s26
      %p40 = scmp.eq.s32.totalorder %s18, 1
      %p41 = por %p39, %p40
      %p43 = scmp.ne.s32.totalorder %s26, %s42
      %p44 = scmp.eq.s32.totalorder %s18, 0
      %p45 = por %p43, %p44
      %s47 = sadd.s32 %s46, 1
      %p50 = scmp.eq.s32.totalorder %s12, 1
      %p51 = scmp.ne.s32.totalorder %s46, %s48
      %p52 = scmp.eq.s32.totalorder %s12, 0
      %p53 = por %p51, %p52
      %p54 = scmp.ne.s32.totalorder %s46, %s48
      %p55 = scmp.eq.s32.totalorder %s17, 1
      %p56 = por %p54, %p55
      %p57 = scmp.ne.s32.totalorder %s48, %s49
      %p58 = scmp.eq.s32.totalorder %s17, 0
      %p59 = por %p57, %p58
      %p60 = scmp.ne.s32.totalorder %s48, %s49
      %p61 = scmp.eq.s32.totalorder %s18, 1
      %p62 = por %p60, %p61
      %p64 = scmp.ne.s32.totalorder %s49, %s63
      %p65 = scmp.eq.s32.totalorder %s18, 0
      %p66 = por %p64, %p65
      %s67 = ssub.s32 %s12, %s19
      %p68 = scmp.eq.s32.totalorder %s67, 0
      %s70 = sadd.s32 %s69, 1
      %s71 = scalar_select %p68, %s69, %s70
      %p74 = pneg %p68
      %p75 = scmp.eq.s32.totalorder %s12, 1
      %p76 = por %p74, %p75
      %p77 = scmp.ne.s32.totalorder %s69, %s72
      %p78 = scmp.eq.s32.totalorder %s12, 0
      %p79 = por %p77, %p78
      %p80 = scmp.ne.s32.totalorder %s69, %s72
      %p81 = scmp.eq.s32.totalorder %s17, 1
      %p82 = por %p80, %p81
      %p83 = scmp.ne.s32.totalorder %s72, %s73
      %p84 = scmp.eq.s32.totalorder %s17, 0
      %p85 = por %p83, %p84
      %p86 = scmp.ne.s32.totalorder %s72, %s73
      %p87 = scmp.eq.s32.totalorder %s18, 1
      %p88 = por %p86, %p87
      %p90 = scmp.ne.s32.totalorder %s73, %s89
      %p91 = scmp.eq.s32.totalorder %s18, 0
      %p92 = por %p90, %p91
      %p93 = scmp.le.s32.totalorder 1, %s12
      %p94 = scmp.lt.s32.totalorder %s12, 3
      %p95 = pnand %p93, %p94
      %p96 = pneg %p95
      // Predicated region
      $region9: #{tpu_custom_call.1} parent=5 // pred_check
        _
      $region10: #{tpu_custom_call.1} parent=5 // pred_check_branch
        %98 = sbr.rel (%p95) target = $region12
      $region11: #{tpu_custom_call.1} parent=5 // pred_region
        %s99 = ssub.s32 %s12, 1
        // Predicated region
        $region13: #{tpu_custom_call.1} parent=11 // pred_check
          %p100 = pneg %p59
        $region14: #{tpu_custom_call.1} parent=11 // pred_check_branch
          %102 = sbr.rel (%p100) target = $region16
        $region15: #{tpu_custom_call.1} parent=11 // pred_region
          %s104 = ssub.s32 1664, 1664
          %105 = vsyncadd [#allocation3], %s104
          %s106 = sshll.u32 [#allocation2], 4
          %s107 = int_to_ptr.vmem [resolvable:$true] %s106
          %112 = dma.hbm_to_vmem [thread:$0]  %s1, 1664, %s107, [#allocation3], 128, 128, 8
        $region16: #{tpu_custom_call.1} parent=11 // pred_fallthru
          _
      $region12: #{tpu_custom_call.1} parent=5 // pred_fallthru
        _
      %p113 = scmp.lt.s32.totalorder %s12, 2
      // Predicated region
      $region17: #{tpu_custom_call.1} parent=5 // pred_check
        %p114 = pneg %p113
      $region18: #{tpu_custom_call.1} parent=5 // pred_check_branch
        %116 = sbr.rel (%p114) target = $region20
      $region19: #{tpu_custom_call.1} parent=5 // pred_region
        // Predicated region
        $region21: #{tpu_custom_call.1} parent=19 // pred_check
          %p117 = pneg %p32
        $region22: #{tpu_custom_call.1} parent=19 // pred_check_branch
          %119 = sbr.rel (%p117) target = $region24
        $region23: #{tpu_custom_call.1} parent=19 // pred_region
          %s120 = smul.u32 4, %s12
          %p121 = scmp.lt.s32.totalorder %s120, 7
          %s122 = scalar_select %p121, %s120, 7
          %s123 = smul.addr %s122, 8
          %s124 = scalar_lea.vmem %s0, %s123
          %s125 = smul.u32 4, %s12
        $region24: #{tpu_custom_call.1} parent=19 // pred_fallthru
          _
      $region20: #{tpu_custom_call.1} parent=5 // pred_fallthru
        _
      %p126 = scmp.le.s32.totalorder 1, %s12
      %p127 = scmp.lt.s32.totalorder %s12, 3
      %p128 = pnand %p126, %p127
      %p129 = pneg %p128
      // Predicated region
      $region25: #{tpu_custom_call.1} parent=5 // pred_check
        _
      $region26: #{tpu_custom_call.1} parent=5 // pred_check_branch
        %131 = sbr.rel (%p128) target = $region28
      $region27: #{tpu_custom_call.1} parent=5 // pred_region
        %s132 = ssub.s32 %s12, 1
        // Predicated region
        $region29: #{tpu_custom_call.1} parent=27 // pred_check
          %p133 = pneg %p59
        $region30: #{tpu_custom_call.1} parent=27 // pred_check_branch
          %135 = sbr.rel (%p133) target = $region32
        $region31: #{tpu_custom_call.1} parent=27 // pred_region
          %136 = dma.done [#allocation3], 1664
        $region32: #{tpu_custom_call.1} parent=27 // pred_fallthru
          _
        %s137 = smul.u32 4, %s17
        %p138 = scmp.lt.s32.totalorder %s137, 7
        %s139 = scalar_select %p138, %s137, 7
        %s140 = smul.addr %s139, 8
        %s141 = scalar_lea.vmem %s0, %s140
        %p142 = pneg %p38
        %p143 = pneg %p35
        %p144 = pneg %p59
        %p145 = pneg %p56
        %p146 = pneg %p85
        %p147 = pneg %p82
        %s148 = sand.u32 %s72, 1
        %s149 = scalar_lea.sflag [#allocation4], %s148
        %s150 = sand.u32 %s72, 1
        %s151 = smul.addr %s150, 32
        %s152 = scalar_lea.vmem [#allocation5], %s151
        %s153 = smul.u32 4, %s17
        %p154 = scmp.lt.s32.totalorder %s153, 7
        %s155 = scalar_select %p154, %s153, 7
        %s156 = smul.addr %s155, 8
        %s157 = scalar_lea.vmem %s0, %s156
        %s158 = smul.u32 4, %s17
        %s159 = smul.u32 4, %s17
        %v160 = vld [vmem:[%s157] sm:$0xff]
        %v161 = vld [vmem:[%s157 + $0x8] sm:$0xff]
        %v162 = vld [vmem:[%s157 + $0x10] sm:$0xff]
        %v163 = vld [vmem:[%s157 + $0x18] sm:$0xff]
        %v164 = vld [vmem:[#allocation2] sm:$0xff]
        %v165 = vld [vmem:[#allocation2 + $0x8] sm:$0xff]
        %v166 = vld [vmem:[#allocation2 + $0x50] sm:$0x1]
        %v167 = vlaneseq
        %v168 = vshrl.u32 %v167, 7
        %v169 = vsub.s32 0, %v168
        %v170 = vrot.slane %v166, %v169
        %vm171 = vcmask 130048
        %v173 = vsel %vm171, %v160, 0
        %v176 = vsel %vm171, %v161, 0
        %v179 = vsel %vm171, %v162, 0
        %v182 = vsel %vm171, %v163, 0
        %184 = vmatprep.subr.mxu0 0.0
        %185 = vmatpush1.msra.mxu0 %v164
        %186 = vmatprep.subr.mxu0 0.0
        %187 = vmatpush1.msra.mxu0 %v165
        %188 = vmatprep.subr.mxu0 0.0
        %189 = vmatpush1.msra.mxu0 0.0
        %190 = vmatprep.subr.mxu0 0.0
        %191 = vmatpush1.msra.mxu0 0.0
        %192 = vmatprep.subr.mxu0 0.0
        %193 = vmatpush1.msra.mxu0 0.0
        %194 = vmatprep.subr.mxu0 0.0
        %195 = vmatpush1.msra.mxu0 0.0
        %196 = vmatprep.subr.mxu0 0.0
        %197 = vmatpush1.msra.mxu0 0.0
        %198 = vmatprep.subr.mxu0 0.0
        %199 = vmatpush1.msra.mxu0 0.0
        %200 = vmatprep.subr.mxu0 0.0
        %201 = vmatpush1.msra.mxu0 0.0
        %202 = vmatprep.subr.mxu0 0.0
        %203 = vmatpush1.msra.mxu0 0.0
        %204 = vmatprep.subr.mxu0 0.0
        %205 = vmatpush1.msra.mxu0 0.0
        %206 = vmatprep.subr.mxu0 0.0
        %207 = vmatpush1.msra.mxu0 0.0
        %208 = vmatprep.subr.mxu0 0.0
        %209 = vmatpush1.msra.mxu0 0.0
        %210 = vmatprep.subr.mxu0 0.0
        %211 = vmatpush1.msra.mxu0 0.0
        %212 = vmatprep.subr.mxu0 0.0
        %213 = vmatpush1.msra.mxu0 0.0
        %214 = vmatprep.subr.mxu0 0.0
        %215 = vmatpush1.msra.mxu0 0.0
        %216 = vmatprep.subr.mxu0 0.0
        %217 = vmatpush1.msra.mxu0 0.0
        %218 = vmatprep.subr.mxu0 0.0
        %219 = vmatpush1.msra.mxu0 0.0
        %220 = vmatprep.subr.mxu0 0.0
        %221 = vmatpush1.msra.mxu0 0.0
        %222 = vmatprep.subr.mxu0 0.0
        %223 = vmatpush1.msra.mxu0 0.0
        %224 = vmatprep.subr.mxu0 0.0
        %225 = vmatpush1.msra.mxu0 0.0
        %226 = vmatprep.subr.mxu0 0.0
        %227 = vmatpush1.msra.mxu0 0.0
        %228 = vmatprep.subr.mxu0 0.0
        %229 = vmatpush1.msra.mxu0 0.0
        %230 = vmatprep.subr.mxu0 0.0
        %231 = vmatpush1.msra.mxu0 0.0
        %232 = vmatprep.subr.mxu0 0.0
        %233 = vmatpush1.msra.mxu0 0.0
        %234 = vmatprep.subr.mxu0 0.0
        %235 = vmatpush1.msra.mxu0 0.0
        %236 = vmatprep.subr.mxu0 0.0
        %237 = vmatpush1.msra.mxu0 0.0
        %238 = vmatprep.subr.mxu0 0.0
        %239 = vmatpush1.msra.mxu0 0.0
        %240 = vmatprep.subr.mxu0 0.0
        %241 = vmatpush1.msra.mxu0 0.0
        %242 = vmatprep.subr.mxu0 0.0
        %243 = vmatpush1.msra.mxu0 0.0
        %244 = vmatprep.subr.mxu0 0.0
        %245 = vmatpush1.msra.mxu0 0.0
        %246 = vmatprep.subr.mxu0 0.0
        %247 = vmatpush1.msra.mxu0 0.0
        %248 = vmatprep.mubr.f32.mxu0 0.0
        %249 = vmatmul.mubr.f32.gmra.mrb[0].mxu0 %v173
        %v250 = vpop.f32.mrb[0].mxu0
        %v251 = vadd.f32 %v170, %v250
        %v252 = vpop.f32.mrb[0].mxu0
        %253 = vmatprep.mubr.f32.mxu0 0.0
        %254 = vmatmul.mubr.f32.gmra.mrb[0].mxu0 %v176
        %v255 = vpop.f32.mrb[0].mxu0
        %v256 = vadd.f32 %v170, %v255
        %v257 = vpop.f32.mrb[0].mxu0
        %258 = vmatprep.mubr.f32.mxu0 0.0
        %259 = vmatmul.mubr.f32.gmra.mrb[0].mxu0 %v179
        %v260 = vpop.f32.mrb[0].mxu0
        %v261 = vadd.f32 %v170, %v260
        %v262 = vpop.f32.mrb[0].mxu0
        %263 = vmatprep.mubr.f32.mxu0 0.0
        %264 = vmatmul.mubr.f32.gmra.mrb[0].mxu0 %v182
        %v265 = vpop.f32.mrb[0].mxu0
        %v266 = vadd.f32 %v170, %v265
        %v267 = vpop.f32.mrb[0].mxu0
        %268 = vdwg.mxu0
        %v269 = vmax.f32 %v251, 0.0
        %v270 = vmax.f32 %v256, 0.0
        %v271 = vmax.f32 %v261, 0.0
        %v272 = vmax.f32 %v266, 0.0
        %v273 = vld [vmem:[#allocation2 + $0x10] sm:$0xff]
        %v274 = vld [vmem:[#allocation2 + $0x18] sm:$0xff]
        %v275 = vld [vmem:[#allocation2 + $0x20] sm:$0xff]
        %v276 = vld [vmem:[#allocation2 + $0x28] sm:$0xff]
        %v277 = vld [vmem:[#allocation2 + $0x58] sm:$0x1]
        %v278 = vlaneseq
        %v279 = vshrl.u32 %v278, 7
        %v280 = vsub.s32 0, %v279
        %v281 = vrot.slane %v277, %v280
        %vm282 = vcmask 261120
        %v284 = vsel %vm282, %v269, 0
        %v287 = vsel %vm282, %v270, 0
        %v290 = vsel %vm282, %v271, 0
        %v293 = vsel %vm282, %v272, 0
        %295 = vmatprep.subr.mxu0 0.0
        %296 = vmatpush1.msra.mxu0 %v273
        %297 = vmatprep.subr.mxu0 0.0
        %298 = vmatpush1.msra.mxu0 %v274
        %299 = vmatprep.subr.mxu0 0.0
        %300 = vmatpush1.msra.mxu0 %v275
        %301 = vmatprep.subr.mxu0 0.0
        %302 = vmatpush1.msra.mxu0 %v276
        %303 = vmatprep.subr.mxu0 0.0
        %304 = vmatpush1.msra.mxu0 0.0
        %305 = vmatprep.subr.mxu0 0.0
        %306 = vmatpush1.msra.mxu0 0.0
        %307 = vmatprep.subr.mxu0 0.0
        %308 = vmatpush1.msra.mxu0 0.0
        %309 = vmatprep.subr.mxu0 0.0
        %310 = vmatpush1.msra.mxu0 0.0
        %311 = vmatprep.subr.mxu0 0.0
        %312 = vmatpush1.msra.mxu0 0.0
        %313 = vmatprep.subr.mxu0 0.0
        %314 = vmatpush1.msra.mxu0 0.0
        %315 = vmatprep.subr.mxu0 0.0
        %316 = vmatpush1.msra.mxu0 0.0
        %317 = vmatprep.subr.mxu0 0.0
        %318 = vmatpush1.msra.mxu0 0.0
        %319 = vmatprep.subr.mxu0 0.0
        %320 = vmatpush1.msra.mxu0 0.0
        %321 = vmatprep.subr.mxu0 0.0
        %322 = vmatpush1.msra.mxu0 0.0
        %323 = vmatprep.subr.mxu0 0.0
        %324 = vmatpush1.msra.mxu0 0.0
        %325 = vmatprep.subr.mxu0 0.0
        %326 = vmatpush1.msra.mxu0 0.0
        %327 = vmatprep.subr.mxu0 0.0
        %328 = vmatpush1.msra.mxu0 0.0
        %329 = vmatprep.subr.mxu0 0.0
        %330 = vmatpush1.msra.mxu0 0.0
        %331 = vmatprep.subr.mxu0 0.0
        %332 = vmatpush1.msra.mxu0 0.0
        %333 = vmatprep.subr.mxu0 0.0
        %334 = vmatpush1.msra.mxu0 0.0
        %335 = vmatprep.subr.mxu0 0.0
        %336 = vmatpush1.msra.mxu0 0.0
        %337 = vmatprep.subr.mxu0 0.0
        %338 = vmatpush1.msra.mxu0 0.0
        %339 = vmatprep.subr.mxu0 0.0
        %340 = vmatpush1.msra.mxu0 0.0
        %341 = vmatprep.subr.mxu0 0.0
        %342 = vmatpush1.msra.mxu0 0.0
        %343 = vmatprep.subr.mxu0 0.0
        %344 = vmatpush1.msra.mxu0 0.0
        %345 = vmatprep.subr.mxu0 0.0
        %346 = vmatpush1.msra.mxu0 0.0
        %347 = vmatprep.subr.mxu0 0.0
        %348 = vmatpush1.msra.mxu0 0.0
        %349 = vmatprep.subr.mxu0 0.0
        %350 = vmatpush1.msra.mxu0 0.0
        %351 = vmatprep.subr.mxu0 0.0
        %352 = vmatpush1.msra.mxu0 0.0
        %353 = vmatprep.subr.mxu0 0.0
        %354 = vmatpush1.msra.mxu0 0.0
        %355 = vmatprep.subr.mxu0 0.0
        %356 = vmatpush1.msra.mxu0 0.0
        %357 = vmatprep.subr.mxu0 0.0
        %358 = vmatpush1.msra.mxu0 0.0
        %359 = vmatprep.mubr.f32.mxu0 0.0
        %360 = vmatmul.mubr.f32.gmra.mrb[0].mxu0 %v284
        %v361 = vpop.f32.mrb[0].mxu0
        %v362 = vadd.f32 %v281, %v361
        %v363 = vpop.f32.mrb[0].mxu0
        %364 = vmatprep.mubr.f32.mxu0 0.0
        %365 = vmatmul.mubr.f32.gmra.mrb[0].mxu0 %v287
        %v366 = vpop.f32.mrb[0].mxu0
        %v367 = vadd.f32 %v281, %v366
        %v368 = vpop.f32.mrb[0].mxu0
        %369 = vmatprep.mubr.f32.mxu0 0.0
        %370 = vmatmul.mubr.f32.gmra.mrb[0].mxu0 %v290
        %v371 = vpop.f32.mrb[0].mxu0
        %v372 = vadd.f32 %v281, %v371
        %v373 = vpop.f32.mrb[0].mxu0
        %374 = vmatprep.mubr.f32.mxu0 0.0
        %375 = vmatmul.mubr.f32.gmra.mrb[0].mxu0 %v293
        %v376 = vpop.f32.mrb[0].mxu0
        %v377 = vadd.f32 %v281, %v376
        %v378 = vpop.f32.mrb[0].mxu0
        %379 = vdwg.mxu0
        %v380 = vmax.f32 %v362, 0.0
        %v381 = vmax.f32 %v367, 0.0
        %v382 = vmax.f32 %v372, 0.0
        %v383 = vmax.f32 %v377, 0.0
        %v384 = vld [vmem:[#allocation2 + $0x30] sm:$0xff]
        %v385 = vld [vmem:[#allocation2 + $0x38] sm:$0xff]
        %v386 = vld [vmem:[#allocation2 + $0x40] sm:$0xff]
        %v387 = vld [vmem:[#allocation2 + $0x48] sm:$0xff]
        %v388 = vld [vmem:[#allocation2 + $0x60] sm:$0x1]
        %v389 = vlaneseq
        %v390 = vshrl.u32 %v389, 7
        %v391 = vsub.s32 0, %v390
        %v392 = vrot.slane %v388, %v391
        %v394 = vsel %vm282, %v380, 0
        %v397 = vsel %vm282, %v381, 0
        %v400 = vsel %vm282, %v382, 0
        %v403 = vsel %vm282, %v383, 0
        %405 = vmatprep.subr.mxu0 0.0
        %406 = vmatpush1.msra.mxu0 %v384
        %407 = vmatprep.subr.mxu0 0.0
        %408 = vmatpush1.msra.mxu0 %v385
        %409 = vmatprep.subr.mxu0 0.0
        %410 = vmatpush1.msra.mxu0 %v386
        %411 = vmatprep.subr.mxu0 0.0
        %412 = vmatpush1.msra.mxu0 %v387
        %413 = vmatprep.subr.mxu0 0.0
        %414 = vmatpush1.msra.mxu0 0.0
        %415 = vmatprep.subr.mxu0 0.0
        %416 = vmatpush1.msra.mxu0 0.0
        %417 = vmatprep.subr.mxu0 0.0
        %418 = vmatpush1.msra.mxu0 0.0
        %419 = vmatprep.subr.mxu0 0.0
        %420 = vmatpush1.msra.mxu0 0.0
        %421 = vmatprep.subr.mxu0 0.0
        %422 = vmatpush1.msra.mxu0 0.0
        %423 = vmatprep.subr.mxu0 0.0
        %424 = vmatpush1.msra.mxu0 0.0
        %425 = vmatprep.subr.mxu0 0.0
        %426 = vmatpush1.msra.mxu0 0.0
        %427 = vmatprep.subr.mxu0 0.0
        %428 = vmatpush1.msra.mxu0 0.0
        %429 = vmatprep.subr.mxu0 0.0
        %430 = vmatpush1.msra.mxu0 0.0
        %431 = vmatprep.subr.mxu0 0.0
        %432 = vmatpush1.msra.mxu0 0.0
        %433 = vmatprep.subr.mxu0 0.0
        %434 = vmatpush1.msra.mxu0 0.0
        %435 = vmatprep.subr.mxu0 0.0
        %436 = vmatpush1.msra.mxu0 0.0
        %437 = vmatprep.subr.mxu0 0.0
        %438 = vmatpush1.msra.mxu0 0.0
        %439 = vmatprep.subr.mxu0 0.0
        %440 = vmatpush1.msra.mxu0 0.0
        %441 = vmatprep.subr.mxu0 0.0
        %442 = vmatpush1.msra.mxu0 0.0
        %443 = vmatprep.subr.mxu0 0.0
        %444 = vmatpush1.msra.mxu0 0.0
        %445 = vmatprep.subr.mxu0 0.0
        %446 = vmatpush1.msra.mxu0 0.0
        %447 = vmatprep.subr.mxu0 0.0
        %448 = vmatpush1.msra.mxu0 0.0
        %449 = vmatprep.subr.mxu0 0.0
        %450 = vmatpush1.msra.mxu0 0.0
        %451 = vmatprep.subr.mxu0 0.0
        %452 = vmatpush1.msra.mxu0 0.0
        %453 = vmatprep.subr.mxu0 0.0
        %454 = vmatpush1.msra.mxu0 0.0
        %455 = vmatprep.subr.mxu0 0.0
        %456 = vmatpush1.msra.mxu0 0.0
        %457 = vmatprep.subr.mxu0 0.0
        %458 = vmatpush1.msra.mxu0 0.0
        %459 = vmatprep.subr.mxu0 0.0
        %460 = vmatpush1.msra.mxu0 0.0
        %461 = vmatprep.subr.mxu0 0.0
        %462 = vmatpush1.msra.mxu0 0.0
        %463 = vmatprep.subr.mxu0 0.0
        %464 = vmatpush1.msra.mxu0 0.0
        %465 = vmatprep.subr.mxu0 0.0
        %466 = vmatpush1.msra.mxu0 0.0
        %467 = vmatprep.subr.mxu0 0.0
        %468 = vmatpush1.msra.mxu0 0.0
        %469 = vmatprep.mubr.f32.mxu0 0.0
        %470 = vmatmul.mubr.f32.gmra.mrb[0].mxu0 %v394
        %v471 = vpop.f32.mrb[0].mxu0
        %v472 = vadd.f32 %v392, %v471
        %v473 = vpop.f32.mrb[0].mxu0
        %474 = vmatprep.mubr.f32.mxu0 0.0
        %475 = vmatmul.mubr.f32.gmra.mrb[0].mxu0 %v397
        %v476 = vpop.f32.mrb[0].mxu0
        %v477 = vadd.f32 %v392, %v476
        %v478 = vpop.f32.mrb[0].mxu0
        %479 = vmatprep.mubr.f32.mxu0 0.0
        %480 = vmatmul.mubr.f32.gmra.mrb[0].mxu0 %v400
        %v481 = vpop.f32.mrb[0].mxu0
        %v482 = vadd.f32 %v392, %v481
        %v483 = vpop.f32.mrb[0].mxu0
        %484 = vmatprep.mubr.f32.mxu0 0.0
        %485 = vmatmul.mubr.f32.gmra.mrb[0].mxu0 %v403
        %v486 = vpop.f32.mrb[0].mxu0
        %v487 = vadd.f32 %v392, %v486
        %v488 = vpop.f32.mrb[0].mxu0
        %489 = vdwg.mxu0
        %v490 = vlaneseq
        %v491 = vand.u32 %v490, 127
        %v492 = vmax.f32 %v472, -20.0
        %v493 = vmax.f32 %v477, -20.0
        %v494 = vmax.f32 %v482, -20.0
        %v495 = vmax.f32 %v487, -20.0
        %v496 = vmin.f32 %v492, 3.0
        %v497 = vmin.f32 %v493, 3.0
        %v498 = vmin.f32 %v494, 3.0
        %v499 = vmin.f32 %v495, 3.0
        %v500 = vmul.f32 %v496, 1.442695
        %v501 = vpow.pop %v500
        %v502 = vmul.f32 %v497, 1.442695
        %v503 = vpow.pop %v502
        %v504 = vmul.f32 %v498, 1.442695
        %v505 = vpow.pop %v504
        %v506 = vmul.f32 %v499, 1.442695
        %v507 = vpow.pop %v506
        %vm508 = vcmp.lt.s32.totalorder %v491, 4
        %v509 = vsel %vm508, %v472, %v501
        %v510 = vsel %vm508, %v477, %v503
        %v511 = vsel %vm508, %v482, %v505
        %v512 = vsel %vm508, %v487, %v507
        %513 = vst [vmem:[%s152] sm:$0xff] %v509
        %514 = vst [vmem:[%s152 + $0x8] sm:$0xff] %v510
        %515 = vst [vmem:[%s152 + $0x10] sm:$0xff] %v511
        %516 = vst [vmem:[%s152 + $0x18] sm:$0xff] %v512
        %s517 = sand.u32 %s72, 1
        %s518 = scalar_lea.sflag [#allocation4], %s517
        %s519 = sand.u32 %s72, 1
        %s520 = smul.addr %s519, 32
        %s521 = scalar_lea.vmem [#allocation5], %s520
        // Predicated region
        $region33: #{tpu_custom_call.1} parent=27 // pred_check
          %p522 = pneg %p82
        $region34: #{tpu_custom_call.1} parent=27 // pred_check_branch
          %524 = sbr.rel (%p522) target = $region36
        $region35: #{tpu_custom_call.1} parent=27 // pred_region
          %s525 = smul.u32 4, %s17
          %s527 = ssub.s32 512, 512
          %528 = vsyncadd %s518, %s527
          %s529 = smul.addr %s525, 128
          %s530 = scalar_lea.hbm %s2, %s529
          %s531 = sshll.u32 %s521, 4
          %s532 = int_to_ptr.vmem [resolvable:$true] %s531
          %537 = dma.vmem_to_hbm [thread:$0]  %s532, 512, %s530, %s518, 128, 128, 8
        $region36: #{tpu_custom_call.1} parent=27 // pred_fallthru
          _
      $region28: #{tpu_custom_call.1} parent=5 // pred_fallthru
        _
      %p538 = scmp.le.s32.totalorder 2, %s12
      // Predicated region
      $region37: #{tpu_custom_call.1} parent=5 // pred_check
        %p539 = pneg %p538
      $region38: #{tpu_custom_call.1} parent=5 // pred_check_branch
        %541 = sbr.rel (%p539) target = $region40
      $region39: #{tpu_custom_call.1} parent=5 // pred_region
        %s542 = ssub.s32 %s12, 2
        // Predicated region
        $region41: #{tpu_custom_call.1} parent=39 // pred_check
          %p543 = pneg %p88
        $region42: #{tpu_custom_call.1} parent=39 // pred_check_branch
          %545 = sbr.rel (%p543) target = $region44
        $region43: #{tpu_custom_call.1} parent=39 // pred_region
          %s546 = sand.u32 %s73, 1
          %s547 = scalar_lea.sflag [#allocation4], %s546
          %s548 = sand.u32 %s73, 1
          %s549 = smul.addr %s548, 32
          %s550 = scalar_lea.vmem [#allocation5], %s549
          %551 = dma.done %s547, 512
        $region44: #{tpu_custom_call.1} parent=39 // pred_fallthru
          _
      $region40: #{tpu_custom_call.1} parent=5 // pred_fallthru
        _
    $region6: #{tpu_custom_call.1} parent=1 // loop_footer
      %s16 = sadd.s32 1, %s12
    $region7: #{tpu_custom_call.1} parent=1 // loop_footer_branch
      %11 = sbr.rel target = $region3
    $region8: #{tpu_custom_call.1} parent=1 // loop_exit
      _
    %552 = vsyncpa [#allocation3], 1
    %s553 = scalar_lea.sflag [#allocation3], 1
    %554 = vsyncpa %s553, 1
    %555 = vsyncpa [#allocation4], 1
    %s556 = scalar_lea.sflag [#allocation4], 1
    %557 = vsyncpa %s556, 1

</llo_original>
